<compile_context>
chip_gen: v6e
topology: v6e:2x2x1
jax: 0.10.0
libtpu: 0.0.40
codegen_flags: <defaults>
</compile_context>

<pallas_src>
import functools
import math

import jax
import jax.numpy as jnp
from jax.experimental import pallas as pl
from jax.experimental.pallas import tpu as pltpu

LN_EPS = 1e-5           # PyTorch nn.LayerNorm default
MIN_GRID_STEPS = 8      # keep >= this many grid steps (v7x megacore balance)


def _round_up(x, m):
    return ((x + m - 1) // m) * m


def _cdiv(a, b):
    return -(-a // b)


def _block_diag(w, g):
    """[din, dout] -> [g*din, g*dout] with g copies of w on the diagonal."""
    din, dout = w.shape
    out = jnp.zeros((g * din, g * dout), w.dtype)
    for i in range(g):
        out = out.at[i * din:(i + 1) * din, i * dout:(i + 1) * dout].set(w)
    return out


def _apply_activation(y, activation, approx_sigmoid=False):
    if activation == "sigmoid":
        if approx_sigmoid:
            # exp runs on the EUP; the divide becomes an EUP approx reciprocal
            # instead of a VALU divide (only valid inside a Pallas kernel).
            return pl.reciprocal(1.0 + jnp.exp(-y), approx=True)
        return jax.nn.sigmoid(y)
    elif activation == "relu":
        return jnp.maximum(y, 0.0)
    elif activation == "leakyrelu":
        return jnp.where(y >= 0, y, 0.2 * y)
    elif activation == "tanh":
        return jnp.tanh(y)
    elif activation == "gelu":
        return jax.nn.gelu(y)
    else:
        raise ValueError(f"activation {activation} not recognized")


def fused_mlp_kernel(x_ref, *refs, layer_flags, activation, approx_sigmoid):
    """All layers fused on one lane-packed row tile.

    refs = (w0, vec0, w1, vec1, ..., ln_avg, o_ref)
      w_i    : [G*din_i, G*dout_i]   block-diagonal weight (bf16 or f32)
      vec_i  : [3, G*dout_i] f32     rows = (bias, ln_gamma, ln_beta), G-tiled
      ln_avg : [G*h, G*h]            block-diagonal (1/h) averaging matrix
    Per layer: y = act(h @ W + b) [+ h if skip] [group-LayerNorm if use_ln].
    """
    o_ref = refs[-1]
    ln_avg_ref = refs[-2]
    p = refs[:-2]

    h = x_ref[...].astype(jnp.float32)                       # [tm, G*din]
    for li, (skip, use_ln) in enumerate(layer_flags):
        w_ref = p[2 * li + 0]
        vec_ref = p[2 * li + 1]
        b = vec_ref[0:1, :]                                  # [1, G*dout] f32

        # MXU matmul: operands in the (pre-cast) weight dtype (bf16 fast path,
        # f32 exact path); accumulation always f32.
        y = jnp.dot(h.astype(w_ref.dtype), w_ref[...],
                    preferred_element_type=jnp.float32) + b
        y = _apply_activation(y, activation, approx_sigmoid)

        if skip:                                             # requires din == dout
            y = y + h

        if use_ln:
            gamma = vec_ref[1:2, :]
            beta = vec_ref[2:3, :]
            a = ln_avg_ref[...]
            # Per-group (= per original row) LayerNorm. Group means and the
            # centered second moment come from the block-diagonal averaging
            # matmul (MXU, f32 accumulation) -> lane-dense, no XLU reductions.
            mean = jnp.dot(y.astype(a.dtype), a,
                           preferred_element_type=jnp.float32)
            d = y - mean
            var = jnp.dot((d * d).astype(a.dtype), a,
                          preferred_element_type=jnp.float32)
            y = d * jax.lax.rsqrt(var + LN_EPS)              # rsqrt -> EUP
            y = y * gamma + beta

        h = y

    o_ref[...] = h.astype(o_ref.dtype)


def multilayer_ffn_forward(x, layers, activation, *, approx_sigmoid=True,
                           matmul_dtype=jnp.bfloat16, lane_groups=4,
                           tile_m=1024):
    """x: [batch, ..., input_dim] -> [batch, ..., output_dim].

    One fused pallas_call. `lane_groups` (G) independent rows are packed along
    the lane axis ([N, d] -> [N/G, G*d]) and processed with block-diagonal
    weights so every vreg / MXU push is lane-dense. Params stay VMEM-resident
    via constant index_maps. G=4 suits v6e/v7x (256-wide MXU); use G=2 on v5e.
    """
    g = lane_groups
    lead_shape = x.shape[:-1]
    h = x.reshape((-1, x.shape[-1]))
    n, din = h.shape
    dout = layers[-1]["w"].shape[1]
    hidden = layers[0]["w"].shape[1]
    for layer in layers:
        if layer["use_ln"]:
            assert layer["w"].shape[1] == hidden  # one shared LN avg matrix

    # Packed-row tile: as large as possible (amortizes the ~0.35us/grid-step
    # overhead), but capped so big inputs still give >= MIN_GRID_STEPS steps
    # on the "parallel" axis (v7x shards it across its 2 TensorCores).
    n_packed = _cdiv(n, g)
    tm_cap = max(8, _round_up(_cdiv(n_packed, MIN_GRID_STEPS), 8))
    tm = max(8, min(tile_m, tm_cap))
    n_packed_pad = _round_up(n_packed, tm)
    n_pad = n_packed_pad * g
    if n_pad != n:
        # Padded (zero) rows produce well-defined garbage in their own lane
        # groups only (block-diag weights), sliced away below.
        h = jnp.pad(h, ((0, n_pad - n), (0, 0)))
    hp = h.reshape(n_packed_pad, g * din)    # free view: G rows per packed row

    in_specs = [pl.BlockSpec((tm, g * din), lambda i: (i, 0))]
    params, layer_flags = [], []
    for layer in layers:
        d_in, d_out = layer["w"].shape
        # Block-diagonal weight, pre-cast once (bf16 on the fast path).
        w_bd = _block_diag(layer["w"], g).astype(matmul_dtype)
        # bias / ln_gamma / ln_beta packed into one (3, G*dout) f32 operand.
        vec = jnp.concatenate([jnp.tile(layer["b"], (1, g)),
                               jnp.tile(layer["ln_w"], (1, g)),
                               jnp.tile(layer["ln_b"], (1, g))], axis=0)
        in_specs += [pl.BlockSpec((g * d_in, g * d_out), lambda i: (0, 0)),
                     pl.BlockSpec((3, g * d_out), lambda i: (0, 0))]
        params += [w_bd, vec]
        layer_flags.append((layer["skip"], layer["use_ln"]))

    # Shared block-diagonal (1/hidden) averaging matrix for group-LayerNorm.
    ln_avg = _block_diag(jnp.full((hidden, hidden), 1.0 / hidden, jnp.float32),
                         g).astype(matmul_dtype)
    in_specs.append(pl.BlockSpec((g * hidden, g * hidden), lambda i: (0, 0)))
    params.append(ln_avg)

    kernel = functools.partial(
        fused_mlp_kernel,
        layer_flags=tuple(layer_flags),
        activation=activation,
        approx_sigmoid=approx_sigmoid,
    )

    out = pl.pallas_call(
        kernel,
        out_shape=jax.ShapeDtypeStruct((n_packed_pad, g * dout), x.dtype),
        grid_spec=pltpu.PrefetchScalarGridSpec(
            num_scalar_prefetch=0,
            grid=(n_packed_pad // tm,),
            in_specs=in_specs,
            # G*dout (64 for G=4) still < 128 lanes -> masked stores, amortized
            # by the large row tile (full width needs G=8; see review note).
            out_specs=pl.BlockSpec((tm, g * dout), lambda i: (i, 0)),
        ),
        compiler_params=pltpu.CompilerParams(
            dimension_semantics=("parallel",)),
    )(hp, *params)

    return out.reshape(n_pad, dout)[:n].reshape(lead_shape + (dout,))


def init_linear_params(key, in_dim, out_dim):
    """xavier_uniform_ weight + PyTorch-default bias init, deterministic."""
    kw, kb = jax.random.split(key)
    bound_w = math.sqrt(6.0 / (in_dim + out_dim))
    # stored as [in, out] (transposed relative to torch's [out, in])
    w = jax.random.uniform(kw, (in_dim, out_dim), jnp.float32, -bound_w, bound_w)
    bound_b = 1.0 / math.sqrt(in_dim)
    b = jax.random.uniform(kb, (1, out_dim), jnp.float32, -bound_b, bound_b)
    return w, b


def build_multilayer_ffn(key, input_dim, output_dim, num_hidden_layers,
                         hidden_dim, use_layernormalize, skip_connection):
    """List of per-layer param dicts mirroring MultiLayerFeedForwardNN."""
    layers = []

    def make_layer(k, din, dout, ln, skip):
        w, b = init_linear_params(k, din, dout)
        ln_w = jnp.ones((1, dout), jnp.float32)
        ln_b = jnp.zeros((1, dout), jnp.float32)
        # skip only allowed when dims match (SingleFeedForwardNN semantics)
        return dict(w=w, b=b, ln_w=ln_w, ln_b=ln_b,
                    use_ln=ln, skip=(skip and din == dout))

    if num_hidden_layers <= 0:
        k0 = jax.random.fold_in(key, 0)
        layers.append(make_layer(k0, input_dim, output_dim, False, False))
    else:
        k = jax.random.fold_in(key, 0)
        layers.append(make_layer(k, input_dim, hidden_dim,
                                 use_layernormalize, skip_connection))
        for i in range(num_hidden_layers - 1):
            k = jax.random.fold_in(key, i + 1)
            layers.append(make_layer(k, hidden_dim, hidden_dim,
                                     use_layernormalize, skip_connection))
        k = jax.random.fold_in(key, num_hidden_layers)
        layers.append(make_layer(k, hidden_dim, output_dim, False, False))
    return layers


def _reference_forward(x, layers, activation):
    """Pure-JAX, full-precision reference of the same forward."""
    lead_shape = x.shape[:-1]
    h = x.reshape((-1, x.shape[-1])).astype(jnp.float32)
    for layer in layers:
        y = jnp.dot(h, layer["w"],
                    precision=jax.lax.Precision.HIGHEST) + layer["b"]
        y = _apply_activation(y, activation, approx_sigmoid=False)
        if layer["skip"]:
            y = y + h
        if layer["use_ln"]:
            mean = jnp.mean(y, axis=-1, keepdims=True)
            var = jnp.mean((y - mean) ** 2, axis=-1, keepdims=True)
            y = (y - mean) / jnp.sqrt(var + LN_EPS)
            y = y * layer["ln_w"] + layer["ln_b"]
        h = y
    return h.reshape(lead_shape + (h.shape[-1],))


if __name__ == "__main__":
    key = jax.random.PRNGKey(0)
    kx, kp = jax.random.split(key)

    batch, seq = 2, 8
    input_dim, hidden_dim, output_dim = 32, 64, 16
    num_hidden_layers = 2
    activation = "sigmoid"

    x = jax.random.normal(kx, (batch, seq, input_dim), jnp.float32)

    layers = build_multilayer_ffn(
        kp, input_dim, output_dim, num_hidden_layers, hidden_dim,
        use_layernormalize=True, skip_connection=True)

    ref = _reference_forward(x, layers, activation)

    # Exact path (f32 MXU operands, exact sigmoid): tight check; also
    # validates the lane-packing / block-diag / group-LayerNorm math.
    out_exact = multilayer_ffn_forward(
        x, layers, activation, approx_sigmoid=False,
        matmul_dtype=jnp.float32)
    out_exact = jax.block_until_ready(out_exact)
    assert out_exact.shape == (batch, seq, output_dim)
    assert jnp.allclose(out_exact, ref, atol=1e-4, rtol=1e-4)

    # Odd row count: exercises both the G-packing pad and the row-tile pad.
    x_odd = jax.random.normal(jax.random.fold_in(kx, 1), (3, 5, input_dim),
                              jnp.float32)
    ref_odd = _reference_forward(x_odd, layers, activation)
    out_odd = jax.block_until_ready(multilayer_ffn_forward(
        x_odd, layers, activation, approx_sigmoid=False,
        matmul_dtype=jnp.float32))
    assert out_odd.shape == (3, 5, output_dim)
    assert jnp.allclose(out_odd, ref_odd, atol=1e-4, rtol=1e-4)

    # Fast / production path: bf16 MXU operands (f32 accumulation) + EUP
    # approx-reciprocal sigmoid -> looser tolerance (bf16 + approx-rcp errors
    # are amplified through the two LayerNorms).
    out_fast = multilayer_ffn_forward(x, layers, activation,
                                      approx_sigmoid=True,
                                      matmul_dtype=jnp.bfloat16)
    out_fast = jax.block_until_ready(out_fast)
    assert out_fast.shape == (batch, seq, output_dim)
    assert jnp.allclose(out_fast, ref, atol=5e-2, rtol=5e-2)

    print("KERNEL_OK")
</pallas_src>

<mosaic_0001>
module attributes {stable_mosaic.version = 11 : i64} {
  func.func @fused_mlp_kernel(%arg0: i32, %arg1: memref<8x128xf32, #tpu.memory_space<vmem>>, %arg2: memref<128x256xf32, #tpu.memory_space<vmem>>, %arg3: memref<3x256xf32, #tpu.memory_space<vmem>>, %arg4: memref<256x256xf32, #tpu.memory_space<vmem>>, %arg5: memref<3x256xf32, #tpu.memory_space<vmem>>, %arg6: memref<256x64xf32, #tpu.memory_space<vmem>>, %arg7: memref<3x64xf32, #tpu.memory_space<vmem>>, %arg8: memref<256x256xf32, #tpu.memory_space<vmem>>, %arg9: memref<8x64xf32, #tpu.memory_space<vmem>>) attributes {dimension_semantics = [#tpu.dimension_semantics<parallel>], iteration_bounds = array<i64: 1>, scalar_prefetch = 0 : i64, scratch_operands = 0 : i64, tpu.core_type = #tpu.core_type<tc>, window_params = [{transform_indices = @transform_0, window_bounds = array<i64: 8, 128>}, {pipeline_mode = #tpu.pipeline_mode<synchronous>, transform_indices = @transform_1, window_bounds = array<i64: 128, 256>}, {pipeline_mode = #tpu.pipeline_mode<synchronous>, transform_indices = @transform_2, window_bounds = array<i64: 3, 256>}, {pipeline_mode = #tpu.pipeline_mode<synchronous>, transform_indices = @transform_3, window_bounds = array<i64: 256, 256>}, {pipeline_mode = #tpu.pipeline_mode<synchronous>, transform_indices = @transform_4, window_bounds = array<i64: 3, 256>}, {pipeline_mode = #tpu.pipeline_mode<synchronous>, transform_indices = @transform_5, window_bounds = array<i64: 256, 64>}, {pipeline_mode = #tpu.pipeline_mode<synchronous>, transform_indices = @transform_6, window_bounds = array<i64: 3, 64>}, {pipeline_mode = #tpu.pipeline_mode<synchronous>, transform_indices = @transform_7, window_bounds = array<i64: 256, 256>}, {transform_indices = @transform_8, window_bounds = array<i64: 8, 64>}]} {
    %c0 = arith.constant 0 : index
    %c0_0 = arith.constant 0 : index
    %0 = vector.load %arg1[%c0, %c0_0] : memref<8x128xf32, #tpu.memory_space<vmem>>, vector<8x128xf32>
    %c0_1 = arith.constant 0 : index
    %c0_2 = arith.constant 0 : index
    %1 = vector.load %arg3[%c0_1, %c0_2] : memref<3x256xf32, #tpu.memory_space<vmem>>, vector<1x256xf32>
    %c0_3 = arith.constant 0 : index
    %c0_4 = arith.constant 0 : index
    %2 = vector.load %arg2[%c0_3, %c0_4] : memref<128x256xf32, #tpu.memory_space<vmem>>, vector<128x256xf32>
    %cst = arith.constant dense<0.000000e+00> : vector<8x256xf32>
    %3 = tpu.matmul %0, %2, %cst {dimension_numbers = #tpu.dot_dimension_numbers<[1], [0], [0], [1], [0, 0, 1, 1], [], []>} : vector<8x128xf32>, vector<128x256xf32>, vector<8x256xf32> -> vector<8x256xf32>
    %4 = vector.broadcast %1 : vector<1x256xf32> to vector<8x256xf32>
    %5 = arith.addf %3, %4 : vector<8x256xf32>
    %6 = arith.negf %5 : vector<8x256xf32>
    %7 = math.exp %6 : vector<8x256xf32>
    %cst_5 = arith.constant 1.000000e+00 : f32
    %8 = vector.broadcast %cst_5 : f32 to vector<8x256xf32>
    %9 = arith.addf %8, %7 : vector<8x256xf32>
    %10 = arith.divf %8, %9 : vector<8x256xf32>
    %c1 = arith.constant 1 : index
    %c0_6 = arith.constant 0 : index
    %11 = vector.load %arg3[%c1, %c0_6] : memref<3x256xf32, #tpu.memory_space<vmem>>, vector<1x256xf32>
    %c2 = arith.constant 2 : index
    %c0_7 = arith.constant 0 : index
    %12 = vector.load %arg3[%c2, %c0_7] : memref<3x256xf32, #tpu.memory_space<vmem>>, vector<1x256xf32>
    %c0_8 = arith.constant 0 : index
    %c0_9 = arith.constant 0 : index
    %13 = vector.load %arg8[%c0_8, %c0_9] : memref<256x256xf32, #tpu.memory_space<vmem>>, vector<256x256xf32>
    %cst_10 = arith.constant dense<0.000000e+00> : vector<8x256xf32>
    %14 = tpu.matmul %10, %13, %cst_10 {dimension_numbers = #tpu.dot_dimension_numbers<[1], [0], [0], [1], [0, 0, 1, 1], [], []>} : vector<8x256xf32>, vector<256x256xf32>, vector<8x256xf32> -> vector<8x256xf32>
    %15 = arith.subf %10, %14 : vector<8x256xf32>
    %16 = arith.mulf %15, %15 : vector<8x256xf32>
    %cst_11 = arith.constant dense<0.000000e+00> : vector<8x256xf32>
    %17 = tpu.matmul %16, %13, %cst_11 {dimension_numbers = #tpu.dot_dimension_numbers<[1], [0], [0], [1], [0, 0, 1, 1], [], []>} : vector<8x256xf32>, vector<256x256xf32>, vector<8x256xf32> -> vector<8x256xf32>
    %cst_12 = arith.constant 9.99999974E-6 : f32
    %18 = vector.broadcast %cst_12 : f32 to vector<8x256xf32>
    %19 = arith.addf %17, %18 : vector<8x256xf32>
    %20 = math.rsqrt %19 : vector<8x256xf32>
    %21 = arith.mulf %15, %20 : vector<8x256xf32>
    %22 = vector.broadcast %11 : vector<1x256xf32> to vector<8x256xf32>
    %23 = arith.mulf %21, %22 : vector<8x256xf32>
    %24 = vector.broadcast %12 : vector<1x256xf32> to vector<8x256xf32>
    %25 = arith.addf %23, %24 : vector<8x256xf32>
    %c0_13 = arith.constant 0 : index
    %c0_14 = arith.constant 0 : index
    %26 = vector.load %arg5[%c0_13, %c0_14] : memref<3x256xf32, #tpu.memory_space<vmem>>, vector<1x256xf32>
    %c0_15 = arith.constant 0 : index
    %c0_16 = arith.constant 0 : index
    %27 = vector.load %arg4[%c0_15, %c0_16] : memref<256x256xf32, #tpu.memory_space<vmem>>, vector<256x256xf32>
    %cst_17 = arith.constant dense<0.000000e+00> : vector<8x256xf32>
    %28 = tpu.matmul %25, %27, %cst_17 {dimension_numbers = #tpu.dot_dimension_numbers<[1], [0], [0], [1], [0, 0, 1, 1], [], []>} : vector<8x256xf32>, vector<256x256xf32>, vector<8x256xf32> -> vector<8x256xf32>
    %29 = vector.broadcast %26 : vector<1x256xf32> to vector<8x256xf32>
    %30 = arith.addf %28, %29 : vector<8x256xf32>
    %31 = arith.negf %30 : vector<8x256xf32>
    %32 = math.exp %31 : vector<8x256xf32>
    %cst_18 = arith.constant 1.000000e+00 : f32
    %33 = vector.broadcast %cst_18 : f32 to vector<8x256xf32>
    %34 = arith.addf %33, %32 : vector<8x256xf32>
    %35 = arith.divf %33, %34 : vector<8x256xf32>
    %36 = arith.addf %35, %25 : vector<8x256xf32>
    %c1_19 = arith.constant 1 : index
    %c0_20 = arith.constant 0 : index
    %37 = vector.load %arg5[%c1_19, %c0_20] : memref<3x256xf32, #tpu.memory_space<vmem>>, vector<1x256xf32>
    %c2_21 = arith.constant 2 : index
    %c0_22 = arith.constant 0 : index
    %38 = vector.load %arg5[%c2_21, %c0_22] : memref<3x256xf32, #tpu.memory_space<vmem>>, vector<1x256xf32>
    %c0_23 = arith.constant 0 : index
    %c0_24 = arith.constant 0 : index
    %39 = vector.load %arg8[%c0_23, %c0_24] : memref<256x256xf32, #tpu.memory_space<vmem>>, vector<256x256xf32>
    %cst_25 = arith.constant dense<0.000000e+00> : vector<8x256xf32>
    %40 = tpu.matmul %36, %39, %cst_25 {dimension_numbers = #tpu.dot_dimension_numbers<[1], [0], [0], [1], [0, 0, 1, 1], [], []>} : vector<8x256xf32>, vector<256x256xf32>, vector<8x256xf32> -> vector<8x256xf32>
    %41 = arith.subf %36, %40 : vector<8x256xf32>
    %42 = arith.mulf %41, %41 : vector<8x256xf32>
    %cst_26 = arith.constant dense<0.000000e+00> : vector<8x256xf32>
    %43 = tpu.matmul %42, %39, %cst_26 {dimension_numbers = #tpu.dot_dimension_numbers<[1], [0], [0], [1], [0, 0, 1, 1], [], []>} : vector<8x256xf32>, vector<256x256xf32>, vector<8x256xf32> -> vector<8x256xf32>
    %cst_27 = arith.constant 9.99999974E-6 : f32
    %44 = vector.broadcast %cst_27 : f32 to vector<8x256xf32>
    %45 = arith.addf %43, %44 : vector<8x256xf32>
    %46 = math.rsqrt %45 : vector<8x256xf32>
    %47 = arith.mulf %41, %46 : vector<8x256xf32>
    %48 = vector.broadcast %37 : vector<1x256xf32> to vector<8x256xf32>
    %49 = arith.mulf %47, %48 : vector<8x256xf32>
    %50 = vector.broadcast %38 : vector<1x256xf32> to vector<8x256xf32>
    %51 = arith.addf %49, %50 : vector<8x256xf32>
    %c0_28 = arith.constant 0 : index
    %c0_29 = arith.constant 0 : index
    %52 = vector.load %arg7[%c0_28, %c0_29] : memref<3x64xf32, #tpu.memory_space<vmem>>, vector<1x64xf32>
    %c0_30 = arith.constant 0 : index
    %c0_31 = arith.constant 0 : index
    %53 = vector.load %arg6[%c0_30, %c0_31] : memref<256x64xf32, #tpu.memory_space<vmem>>, vector<256x64xf32>
    %cst_32 = arith.constant dense<0.000000e+00> : vector<8x64xf32>
    %54 = tpu.matmul %51, %53, %cst_32 {dimension_numbers = #tpu.dot_dimension_numbers<[1], [0], [0], [1], [0, 0, 1, 1], [], []>} : vector<8x256xf32>, vector<256x64xf32>, vector<8x64xf32> -> vector<8x64xf32>
    %55 = vector.broadcast %52 : vector<1x64xf32> to vector<8x64xf32>
    %56 = arith.addf %54, %55 : vector<8x64xf32>
    %57 = arith.negf %56 : vector<8x64xf32>
    %58 = math.exp %57 : vector<8x64xf32>
    %cst_33 = arith.constant 1.000000e+00 : f32
    %59 = vector.broadcast %cst_33 : f32 to vector<8x64xf32>
    %60 = arith.addf %59, %58 : vector<8x64xf32>
    %61 = arith.divf %59, %60 : vector<8x64xf32>
    %c0_34 = arith.constant 0 : index
    %c0_35 = arith.constant 0 : index
    %62 = vector.load %arg9[%c0_34, %c0_35] : memref<8x64xf32, #tpu.memory_space<vmem>>, vector<8x64xf32>
    tpu.vector_store %arg9[%c0_34, %c0_35], %61 {strides = array<i32>} : memref<8x64xf32, #tpu.memory_space<vmem>>, vector<8x64xf32>,
    return
  }
  func.func @transform_0(%arg0: i32) -> (i32, i32) {
    %c0_i32 = arith.constant 0 : i32
    %c0_i32_0 = arith.constant 0 : i32
    return %arg0, %c0_i32 : i32, i32
  }
  func.func @transform_1(%arg0: i32) -> (i32, i32) {
    %c0_i32 = arith.constant 0 : i32
    %c0_i32_0 = arith.constant 0 : i32
    %c0_i32_1 = arith.constant 0 : i32
    return %c0_i32, %c0_i32_0 : i32, i32
  }
  func.func @transform_2(%arg0: i32) -> (i32, i32) {
    %c0_i32 = arith.constant 0 : i32
    %c0_i32_0 = arith.constant 0 : i32
    %c0_i32_1 = arith.constant 0 : i32
    return %c0_i32, %c0_i32_0 : i32, i32
  }
  func.func @transform_3(%arg0: i32) -> (i32, i32) {
    %c0_i32 = arith.constant 0 : i32
    %c0_i32_0 = arith.constant 0 : i32
    %c0_i32_1 = arith.constant 0 : i32
    return %c0_i32, %c0_i32_0 : i32, i32
  }
  func.func @transform_4(%arg0: i32) -> (i32, i32) {
    %c0_i32 = arith.constant 0 : i32
    %c0_i32_0 = arith.constant 0 : i32
    %c0_i32_1 = arith.constant 0 : i32
    return %c0_i32, %c0_i32_0 : i32, i32
  }
  func.func @transform_5(%arg0: i32) -> (i32, i32) {
    %c0_i32 = arith.constant 0 : i32
    %c0_i32_0 = arith.constant 0 : i32
    %c0_i32_1 = arith.constant 0 : i32
    return %c0_i32, %c0_i32_0 : i32, i32
  }
  func.func @transform_6(%arg0: i32) -> (i32, i32) {
    %c0_i32 = arith.constant 0 : i32
    %c0_i32_0 = arith.constant 0 : i32
    %c0_i32_1 = arith.constant 0 : i32
    return %c0_i32, %c0_i32_0 : i32, i32
  }
  func.func @transform_7(%arg0: i32) -> (i32, i32) {
    %c0_i32 = arith.constant 0 : i32
    %c0_i32_0 = arith.constant 0 : i32
    %c0_i32_1 = arith.constant 0 : i32
    return %c0_i32, %c0_i32_0 : i32, i32
  }
  func.func @transform_8(%arg0: i32) -> (i32, i32) {
    %c0_i32 = arith.constant 0 : i32
    %c0_i32_0 = arith.constant 0 : i32
    return %arg0, %c0_i32 : i32, i32
  }
}

</mosaic_0001>

<llo_original>
// kernel: tpu_custom_call.1
$region0: #{tpu_custom_call.1}
  #allocation0 [shape = 'u32[]', space=smem, size = 0x4, offset = 0x4, fixed_abs, tag = 'smem constant byte address 0x4 - core index']
  #allocation1 [shape = 'u32[144,128]{1,0:T(1,128)}', space=vmem, size = 0x12000, scoped, tag = 'internal scratch']
  %s0 = inlined_call_operand.vmem [shape: f32[8,128], index: 0, kind: input, shape index: {}]
  %s1 = inlined_call_operand.vmem [shape: f32[128,256], index: 1, kind: input, shape index: {}]
  %s2 = inlined_call_operand.vmem [shape: f32[3,256], index: 2, kind: input, shape index: {}]
  %s3 = inlined_call_operand.hbm [shape: f32[256,256], index: 3, kind: input, shape index: {}]
  %s4 = inlined_call_operand.vmem [shape: f32[3,256], index: 4, kind: input, shape index: {}]
  %s5 = inlined_call_operand.vmem [shape: f32[256,64], index: 5, kind: input, shape index: {}]
  %s6 = inlined_call_operand.vmem [shape: f32[3,64], index: 6, kind: input, shape index: {}]
  %s7 = inlined_call_operand.hbm [shape: f32[256,256], index: 7, kind: input, shape index: {}]
  %s8 = inlined_call_operand.hbm [shape: f32[8,64], index: 8, kind: output, shape index: {}]
  %s9 = sld [smem:[#allocation0]]
  $region50: #{tpu_custom_call.1} parent=0
    _
  %s11 = ssub.s32 1, %s9
  %s12 = scalar_select 0, %s11, %s9
  $region1: #{tpu_custom_call.1} parent=0
    #allocation2 [shape = 'u8[262144]{0}', space=vmem, size = 0x40000, scoped, tag = 'input window, operand 3, single buffered']
    #allocation3 [shape = 's32[1]{0}', space=sflag, size = 0x4, scoped, tag = 'scoped memory for tpu_custom_call.1']
    #allocation4 [shape = 's32[1]{0}', space=sflag, size = 0x4, scoped, tag = 'scoped memory for tpu_custom_call.1']
    #allocation5 [shape = 'u8[262144]{0}', space=vmem, size = 0x40000, scoped, tag = 'input window, operand 7, single buffered']
    #allocation6 [shape = 's32[1]{0}', space=sflag, size = 0x4, scoped, tag = 'scoped memory for tpu_custom_call.1']
    #allocation7 [shape = 'u8[4096]{0}', space=vmem, size = 0x1000, scoped, tag = 'output window, operand 0, single buffered']
    %13 = vsyncpa [#allocation3], 0
    %14 = vsyncpa [#allocation6], 0
    %15 = vsyncpa [#allocation4], 0
    // Predicated region
    $region2: #{tpu_custom_call.1} parent=1 // pred_check
      _
    $region3: #{tpu_custom_call.1} parent=1 // pred_check_branch
      %17 = sbr.rel (0) target = $region5
    $region4: #{tpu_custom_call.1} parent=1 // pred_region
      _
    $region5: #{tpu_custom_call.1} parent=1 // pred_fallthru
      _
    // Predicated region
    $region6: #{tpu_custom_call.1} parent=1 // pred_check
      _
    $region7: #{tpu_custom_call.1} parent=1 // pred_check_branch
      %19 = sbr.rel (0) target = $region9
    $region8: #{tpu_custom_call.1} parent=1 // pred_region
      _
    $region9: #{tpu_custom_call.1} parent=1 // pred_fallthru
      _
    // Predicated region
    $region10: #{tpu_custom_call.1} parent=1 // pred_check
      _
    $region11: #{tpu_custom_call.1} parent=1 // pred_check_branch
      %21 = sbr.rel (0) target = $region13
    $region12: #{tpu_custom_call.1} parent=1 // pred_region
      _
    $region13: #{tpu_custom_call.1} parent=1 // pred_fallthru
      _
    // Predicated region
    $region14: #{tpu_custom_call.1} parent=1 // pred_check
      _
    $region15: #{tpu_custom_call.1} parent=1 // pred_check_branch
      %23 = sbr.rel (0) target = $region17
    $region16: #{tpu_custom_call.1} parent=1 // pred_region
      %s25 = ssub.s32 8192, 8192
      %26 = vsyncadd [#allocation3], %s25
      %s27 = sshll.u32 [#allocation2], 4
      %s28 = int_to_ptr.vmem [resolvable:$true] %s27
      %33 = dma.hbm_to_vmem [thread:$0]  %s3, 8192, %s28, [#allocation3], 256, 256, 16
    $region17: #{tpu_custom_call.1} parent=1 // pred_fallthru
      _
    // Predicated region
    $region18: #{tpu_custom_call.1} parent=1 // pred_check
      _
    $region19: #{tpu_custom_call.1} parent=1 // pred_check_branch
      %35 = sbr.rel (0) target = $region21
    $region20: #{tpu_custom_call.1} parent=1 // pred_region
      _
    $region21: #{tpu_custom_call.1} parent=1 // pred_fallthru
      _
    // Predicated region
    $region22: #{tpu_custom_call.1} parent=1 // pred_check
      _
    $region23: #{tpu_custom_call.1} parent=1 // pred_check_branch
      %37 = sbr.rel (0) target = $region25
    $region24: #{tpu_custom_call.1} parent=1 // pred_region
      _
    $region25: #{tpu_custom_call.1} parent=1 // pred_fallthru
      _
    // Predicated region
    $region26: #{tpu_custom_call.1} parent=1 // pred_check
      _
    $region27: #{tpu_custom_call.1} parent=1 // pred_check_branch
      %39 = sbr.rel (0) target = $region29
    $region28: #{tpu_custom_call.1} parent=1 // pred_region
      _
    $region29: #{tpu_custom_call.1} parent=1 // pred_fallthru
      _
    // Predicated region
    $region30: #{tpu_custom_call.1} parent=1 // pred_check
      _
    $region31: #{tpu_custom_call.1} parent=1 // pred_check_branch
      %41 = sbr.rel (0) target = $region33
    $region32: #{tpu_custom_call.1} parent=1 // pred_region
      %s43 = ssub.s32 8192, 8192
      %44 = vsyncadd [#allocation6], %s43
      %s45 = sshll.u32 [#allocation5], 4
      %s46 = int_to_ptr.vmem [resolvable:$true] %s45
      %51 = dma.hbm_to_vmem [thread:$0]  %s7, 8192, %s46, [#allocation6], 256, 256, 16
    $region33: #{tpu_custom_call.1} parent=1 // pred_fallthru
      _
    // Predicated region
    $region34: #{tpu_custom_call.1} parent=1 // pred_check
      _
    $region35: #{tpu_custom_call.1} parent=1 // pred_check_branch
      %53 = sbr.rel (0) target = $region37
    $region36: #{tpu_custom_call.1} parent=1 // pred_region
      %54 = dma.done [#allocation3], 8192
    $region37: #{tpu_custom_call.1} parent=1 // pred_fallthru
      _
    // Predicated region
    $region38: #{tpu_custom_call.1} parent=1 // pred_check
      _
    $region39: #{tpu_custom_call.1} parent=1 // pred_check_branch
      %56 = sbr.rel (0) target = $region41
    $region40: #{tpu_custom_call.1} parent=1 // pred_region
      %57 = dma.done [#allocation6], 8192
    $region41: #{tpu_custom_call.1} parent=1 // pred_fallthru
      _
    %v58 = vld [vmem:[%s0] sm:$0xff]
    %v59 = vld [vmem:[%s2] ss:$4 sm:$0x3]
    %v60 = vld [vmem:[%s1] sm:$0xff]
    %v61 = vld [vmem:[%s1 + $0x8] sm:$0xff]
    %v62 = vld [vmem:[%s1 + $0x10] sm:$0xff]
    %v63 = vld [vmem:[%s1 + $0x18] sm:$0xff]
    %v64 = vld [vmem:[%s1 + $0x20] sm:$0xff]
    %v65 = vld [vmem:[%s1 + $0x28] sm:$0xff]
    %v66 = vld [vmem:[%s1 + $0x30] sm:$0xff]
    %v67 = vld [vmem:[%s1 + $0x38] sm:$0xff]
    %v68 = vld [vmem:[%s1 + $0x40] sm:$0xff]
    %v69 = vld [vmem:[%s1 + $0x48] sm:$0xff]
    %v70 = vld [vmem:[%s1 + $0x50] sm:$0xff]
    %v71 = vld [vmem:[%s1 + $0x58] sm:$0xff]
    %v72 = vld [vmem:[%s1 + $0x60] sm:$0xff]
    %v73 = vld [vmem:[%s1 + $0x68] sm:$0xff]
    %v74 = vld [vmem:[%s1 + $0x70] sm:$0xff]
    %v75 = vld [vmem:[%s1 + $0x78] sm:$0xff]
    %v76 = vld [vmem:[%s1 + $0x80] sm:$0xff]
    %v77 = vld [vmem:[%s1 + $0x88] sm:$0xff]
    %v78 = vld [vmem:[%s1 + $0x90] sm:$0xff]
    %v79 = vld [vmem:[%s1 + $0x98] sm:$0xff]
    %v80 = vld [vmem:[%s1 + $0xa0] sm:$0xff]
    %v81 = vld [vmem:[%s1 + $0xa8] sm:$0xff]
    %v82 = vld [vmem:[%s1 + $0xb0] sm:$0xff]
    %v83 = vld [vmem:[%s1 + $0xb8] sm:$0xff]
    %v84 = vld [vmem:[%s1 + $0xc0] sm:$0xff]
    %v85 = vld [vmem:[%s1 + $0xc8] sm:$0xff]
    %v86 = vld [vmem:[%s1 + $0xd0] sm:$0xff]
    %v87 = vld [vmem:[%s1 + $0xd8] sm:$0xff]
    %v88 = vld [vmem:[%s1 + $0xe0] sm:$0xff]
    %v89 = vld [vmem:[%s1 + $0xe8] sm:$0xff]
    %v90 = vld [vmem:[%s1 + $0xf0] sm:$0xff]
    %v91 = vld [vmem:[%s1 + $0xf8] sm:$0xff]
    %v93 = vlaneseq
    %v94 = vshrl.u32 %v93, 7
    %v95 = vsub.s32 0, %v94
    %v96 = vrot.slane %v59, %v95
    %v97 = vlaneseq
    %v98 = vshrl.u32 %v97, 7
    %v99 = vsub.s32 1, %v98
    %v100 = vrot.slane %v59, %v99
    %103 = vmatprep.subr.mxu0 %v91
    %104 = vmatpush1.msra.mxu0 %v90
    %105 = vmatprep.subr.mxu0 %v89
    %106 = vmatpush1.msra.mxu0 %v88
    %107 = vmatprep.subr.mxu0 %v87
    %108 = vmatpush1.msra.mxu0 %v86
    %109 = vmatprep.subr.mxu0 %v85
    %110 = vmatpush1.msra.mxu0 %v84
    %111 = vmatprep.subr.mxu0 %v83
    %112 = vmatpush1.msra.mxu0 %v82
    %113 = vmatprep.subr.mxu0 %v81
    %114 = vmatpush1.msra.mxu0 %v80
    %115 = vmatprep.subr.mxu0 %v79
    %116 = vmatpush1.msra.mxu0 %v78
    %117 = vmatprep.subr.mxu0 %v77
    %118 = vmatpush1.msra.mxu0 %v76
    %119 = vmatprep.subr.mxu0 %v75
    %120 = vmatpush1.msra.mxu0 %v74
    %121 = vmatprep.subr.mxu0 %v73
    %122 = vmatpush1.msra.mxu0 %v72
    %123 = vmatprep.subr.mxu0 %v71
    %124 = vmatpush1.msra.mxu0 %v70
    %125 = vmatprep.subr.mxu0 %v69
    %126 = vmatpush1.msra.mxu0 %v68
    %127 = vmatprep.subr.mxu0 %v67
    %128 = vmatpush1.msra.mxu0 %v66
    %129 = vmatprep.subr.mxu0 %v65
    %130 = vmatpush1.msra.mxu0 %v64
    %131 = vmatprep.subr.mxu0 %v63
    %132 = vmatpush1.msra.mxu0 %v62
    %133 = vmatprep.subr.mxu0 %v61
    %134 = vmatpush1.msra.mxu0 %v60
    %135 = vmatprep.subr.mxu0 0.0
    %136 = vmatpush2.msra.mxu0 0.0
    %137 = vmatprep.subr.mxu0 0.0
    %138 = vmatpush2.msra.mxu0 0.0
    %139 = vmatprep.subr.mxu0 0.0
    %140 = vmatpush2.msra.mxu0 0.0
    %141 = vmatprep.subr.mxu0 0.0
    %142 = vmatpush2.msra.mxu0 0.0
    %143 = vmatprep.subr.mxu0 0.0
    %144 = vmatpush2.msra.mxu0 0.0
    %145 = vmatprep.subr.mxu0 0.0
    %146 = vmatpush2.msra.mxu0 0.0
    %147 = vmatprep.subr.mxu0 0.0
    %148 = vmatpush2.msra.mxu0 0.0
    %149 = vmatprep.subr.mxu0 0.0
    %150 = vmatpush2.msra.mxu0 0.0
    %151 = vmatprep.subr.mxu0 0.0
    %152 = vmatpush2.msra.mxu0 0.0
    %153 = vmatprep.subr.mxu0 0.0
    %154 = vmatpush2.msra.mxu0 0.0
    %155 = vmatprep.subr.mxu0 0.0
    %156 = vmatpush2.msra.mxu0 0.0
    %157 = vmatprep.subr.mxu0 0.0
    %158 = vmatpush2.msra.mxu0 0.0
    %159 = vmatprep.subr.mxu0 0.0
    %160 = vmatpush2.msra.mxu0 0.0
    %161 = vmatprep.subr.mxu0 0.0
    %162 = vmatpush2.msra.mxu0 0.0
    %163 = vmatprep.subr.mxu0 0.0
    %164 = vmatpush2.msra.mxu0 0.0
    %165 = vmatprep.subr.mxu0 0.0
    %166 = vmatpush2.msra.mxu0 0.0
    %167 = vmatprep.mubr.f32.mxu0 0.0
    %168 = vmatmul.mubr.f32.gmra.mxu0 %v58
    %v169 = vpop.f32.mrf.mxu0
    %v170 = vadd.f32 %v96, %v169
    %v171 = vpop.f32.mrf.mxu0
    %v172 = vadd.f32 %v100, %v171
    %173 = vdwg.mxu0
    %v174 = vxor.u32 %v170, 2147483648
    %v175 = vxor.u32 %v172, 2147483648
    %v176 = vmul.f32 %v174, 1.442695
    %v177 = vpow.pop %v176
    %v178 = vmul.f32 %v175, 1.442695
    %v179 = vpow.pop %v178
    %v180 = vadd.f32 %v177, 1.0
    %v181 = vadd.f32 %v179, 1.0
    %v182 = vrcp.pop %v180
    %v183 = vmul.f32 1.0, %v182
    %v184 = vrcp.pop %v181
    %v185 = vmul.f32 1.0, %v184
    %s186 = scalar_lea.vmem %s2, 1
    %v187 = vld [vmem:[%s186] ss:$4 sm:$0x3]
    %s188 = scalar_lea.vmem %s2, 2
    %v189 = vld [vmem:[%s188] ss:$4 sm:$0x3]
    %v190 = vld [vmem:[#allocation5] sm:$0xff]
    %v191 = vld [vmem:[#allocation5 + $0x8] sm:$0xff]
    %v192 = vld [vmem:[#allocation5 + $0x10] sm:$0xff]
    %v193 = vld [vmem:[#allocation5 + $0x18] sm:$0xff]
    %v194 = vld [vmem:[#allocation5 + $0x20] sm:$0xff]
    %v195 = vld [vmem:[#allocation5 + $0x28] sm:$0xff]
    %v196 = vld [vmem:[#allocation5 + $0x30] sm:$0xff]
    %v197 = vld [vmem:[#allocation5 + $0x38] sm:$0xff]
    %v198 = vld [vmem:[#allocation5 + $0x40] sm:$0xff]
    %v199 = vld [vmem:[#allocation5 + $0x48] sm:$0xff]
    %v200 = vld [vmem:[#allocation5 + $0x50] sm:$0xff]
    %v201 = vld [vmem:[#allocation5 + $0x58] sm:$0xff]
    %v202 = vld [vmem:[#allocation5 + $0x60] sm:$0xff]
    %v203 = vld [vmem:[#allocation5 + $0x68] sm:$0xff]
    %v204 = vld [vmem:[#allocation5 + $0x70] sm:$0xff]
    %v205 = vld [vmem:[#allocation5 + $0x78] sm:$0xff]
    %v206 = vld [vmem:[#allocation5 + $0x80] sm:$0xff]
    %v207 = vld [vmem:[#allocation5 + $0x88] sm:$0xff]
    %v208 = vld [vmem:[#allocation5 + $0x90] sm:$0xff]
    %v209 = vld [vmem:[#allocation5 + $0x98] sm:$0xff]
    %v210 = vld [vmem:[#allocation5 + $0xa0] sm:$0xff]
    %v211 = vld [vmem:[#allocation5 + $0xa8] sm:$0xff]
    %v212 = vld [vmem:[#allocation5 + $0xb0] sm:$0xff]
    %v213 = vld [vmem:[#allocation5 + $0xb8] sm:$0xff]
    %v214 = vld [vmem:[#allocation5 + $0xc0] sm:$0xff]
    %v215 = vld [vmem:[#allocation5 + $0xc8] sm:$0xff]
    %v216 = vld [vmem:[#allocation5 + $0xd0] sm:$0xff]
    %v217 = vld [vmem:[#allocation5 + $0xd8] sm:$0xff]
    %v218 = vld [vmem:[#allocation5 + $0xe0] sm:$0xff]
    %v219 = vld [vmem:[#allocation5 + $0xe8] sm:$0xff]
    %v220 = vld [vmem:[#allocation5 + $0xf0] sm:$0xff]
    %v221 = vld [vmem:[#allocation5 + $0xf8] sm:$0xff]
    %v222 = vld [vmem:[#allocation5 + $0x100] sm:$0xff]
    %v223 = vld [vmem:[#allocation5 + $0x108] sm:$0xff]
    %v224 = vld [vmem:[#allocation5 + $0x110] sm:$0xff]
    %v225 = vld [vmem:[#allocation5 + $0x118] sm:$0xff]
    %v226 = vld [vmem:[#allocation5 + $0x120] sm:$0xff]
    %v227 = vld [vmem:[#allocation5 + $0x128] sm:$0xff]
    %v228 = vld [vmem:[#allocation5 + $0x130] sm:$0xff]
    %v229 = vld [vmem:[#allocation5 + $0x138] sm:$0xff]
    %v230 = vld [vmem:[#allocation5 + $0x140] sm:$0xff]
    %v231 = vld [vmem:[#allocation5 + $0x148] sm:$0xff]
    %v232 = vld [vmem:[#allocation5 + $0x150] sm:$0xff]
    %v233 = vld [vmem:[#allocation5 + $0x158] sm:$0xff]
    %v234 = vld [vmem:[#allocation5 + $0x160] sm:$0xff]
    %v235 = vld [vmem:[#allocation5 + $0x168] sm:$0xff]
    %v236 = vld [vmem:[#allocation5 + $0x170] sm:$0xff]
    %v237 = vld [vmem:[#allocation5 + $0x178] sm:$0xff]
    %v238 = vld [vmem:[#allocation5 + $0x180] sm:$0xff]
    %v239 = vld [vmem:[#allocation5 + $0x188] sm:$0xff]
    %v240 = vld [vmem:[#allocation5 + $0x190] sm:$0xff]
    %v241 = vld [vmem:[#allocation5 + $0x198] sm:$0xff]
    %v242 = vld [vmem:[#allocation5 + $0x1a0] sm:$0xff]
    %v243 = vld [vmem:[#allocation5 + $0x1a8] sm:$0xff]
    %v244 = vld [vmem:[#allocation5 + $0x1b0] sm:$0xff]
    %v245 = vld [vmem:[#allocation5 + $0x1b8] sm:$0xff]
    %v246 = vld [vmem:[#allocation5 + $0x1c0] sm:$0xff]
    %v247 = vld [vmem:[#allocation5 + $0x1c8] sm:$0xff]
    %v248 = vld [vmem:[#allocation5 + $0x1d0] sm:$0xff]
    %v249 = vld [vmem:[#allocation5 + $0x1d8] sm:$0xff]
    %v250 = vld [vmem:[#allocation5 + $0x1e0] sm:$0xff]
    %v251 = vld [vmem:[#allocation5 + $0x1e8] sm:$0xff]
    %v252 = vld [vmem:[#allocation5 + $0x1f0] sm:$0xff]
    %v253 = vld [vmem:[#allocation5 + $0x1f8] sm:$0xff]
    %254 = vmatprep.subr.mxu0 %v221
    %255 = vmatpush1.msra.mxu0 %v220
    %256 = vmatprep.subr.mxu0 %v219
    %257 = vmatpush1.msra.mxu0 %v218
    %258 = vmatprep.subr.mxu0 %v217
    %259 = vmatpush1.msra.mxu0 %v216
    %260 = vmatprep.subr.mxu0 %v215
    %261 = vmatpush1.msra.mxu0 %v214
    %262 = vmatprep.subr.mxu0 %v213
    %263 = vmatpush1.msra.mxu0 %v212
    %264 = vmatprep.subr.mxu0 %v211
    %265 = vmatpush1.msra.mxu0 %v210
    %266 = vmatprep.subr.mxu0 %v209
    %267 = vmatpush1.msra.mxu0 %v208
    %268 = vmatprep.subr.mxu0 %v207
    %269 = vmatpush1.msra.mxu0 %v206
    %270 = vmatprep.subr.mxu0 %v205
    %271 = vmatpush1.msra.mxu0 %v204
    %272 = vmatprep.subr.mxu0 %v203
    %273 = vmatpush1.msra.mxu0 %v202
    %274 = vmatprep.subr.mxu0 %v201
    %275 = vmatpush1.msra.mxu0 %v200
    %276 = vmatprep.subr.mxu0 %v199
    %277 = vmatpush1.msra.mxu0 %v198
    %278 = vmatprep.subr.mxu0 %v197
    %279 = vmatpush1.msra.mxu0 %v196
    %280 = vmatprep.subr.mxu0 %v195
    %281 = vmatpush1.msra.mxu0 %v194
    %282 = vmatprep.subr.mxu0 %v193
    %283 = vmatpush1.msra.mxu0 %v192
    %284 = vmatprep.subr.mxu0 %v191
    %285 = vmatpush1.msra.mxu0 %v190
    %286 = vmatprep.subr.mxu0 %v253
    %287 = vmatpush2.msra.mxu0 %v252
    %288 = vmatprep.subr.mxu0 %v251
    %289 = vmatpush2.msra.mxu0 %v250
    %290 = vmatprep.subr.mxu0 %v249
    %291 = vmatpush2.msra.mxu0 %v248
    %292 = vmatprep.subr.mxu0 %v247
    %293 = vmatpush2.msra.mxu0 %v246
    %294 = vmatprep.subr.mxu0 %v245
    %295 = vmatpush2.msra.mxu0 %v244
    %296 = vmatprep.subr.mxu0 %v243
    %297 = vmatpush2.msra.mxu0 %v242
    %298 = vmatprep.subr.mxu0 %v241
    %299 = vmatpush2.msra.mxu0 %v240
    %300 = vmatprep.subr.mxu0 %v239
    %301 = vmatpush2.msra.mxu0 %v238
    %302 = vmatprep.subr.mxu0 %v237
    %303 = vmatpush2.msra.mxu0 %v236
    %304 = vmatprep.subr.mxu0 %v235
    %305 = vmatpush2.msra.mxu0 %v234
    %306 = vmatprep.subr.mxu0 %v233
    %307 = vmatpush2.msra.mxu0 %v232
    %308 = vmatprep.subr.mxu0 %v231
    %309 = vmatpush2.msra.mxu0 %v230
    %310 = vmatprep.subr.mxu0 %v229
    %311 = vmatpush2.msra.mxu0 %v228
    %312 = vmatprep.subr.mxu0 %v227
    %313 = vmatpush2.msra.mxu0 %v226
    %314 = vmatprep.subr.mxu0 %v225
    %315 = vmatpush2.msra.mxu0 %v224
    %316 = vmatprep.subr.mxu0 %v223
    %317 = vmatpush2.msra.mxu0 %v222
    %318 = vmatprep.mubr.f32.mxu0 %v185
    %319 = vmatmul.mubr.f32.gmra.mxu0 %v183
    %v320 = vpop.f32.mrf.mxu0
    %v321 = vadd.f32 0.0, %v320
    %v322 = vpop.f32.mrf.mxu0
    %v323 = vadd.f32 0.0, %v322
    %324 = vdwg.mxu0
    %v325 = vsub.f32 %v183, %v321
    %v326 = vsub.f32 %v185, %v323
    %v327 = vmul.f32 %v325, %v325
    %v328 = vmul.f32 %v326, %v326
    %329 = vmatprep.subr.mxu0 %v221
    %330 = vmatpush1.msra.mxu0 %v220
    %331 = vmatprep.subr.mxu0 %v219
    %332 = vmatpush1.msra.mxu0 %v218
    %333 = vmatprep.subr.mxu0 %v217
    %334 = vmatpush1.msra.mxu0 %v216
    %335 = vmatprep.subr.mxu0 %v215
    %336 = vmatpush1.msra.mxu0 %v214
    %337 = vmatprep.subr.mxu0 %v213
    %338 = vmatpush1.msra.mxu0 %v212
    %339 = vmatprep.subr.mxu0 %v211
    %340 = vmatpush1.msra.mxu0 %v210
    %341 = vmatprep.subr.mxu0 %v209
    %342 = vmatpush1.msra.mxu0 %v208
    %343 = vmatprep.subr.mxu0 %v207
    %344 = vmatpush1.msra.mxu0 %v206
    %345 = vmatprep.subr.mxu0 %v205
    %346 = vmatpush1.msra.mxu0 %v204
    %347 = vmatprep.subr.mxu0 %v203
    %348 = vmatpush1.msra.mxu0 %v202
    %349 = vmatprep.subr.mxu0 %v201
    %350 = vmatpush1.msra.mxu0 %v200
    %351 = vmatprep.subr.mxu0 %v199
    %352 = vmatpush1.msra.mxu0 %v198
    %353 = vmatprep.subr.mxu0 %v197
    %354 = vmatpush1.msra.mxu0 %v196
    %355 = vmatprep.subr.mxu0 %v195
    %356 = vmatpush1.msra.mxu0 %v194
    %357 = vmatprep.subr.mxu0 %v193
    %358 = vmatpush1.msra.mxu0 %v192
    %359 = vmatprep.subr.mxu0 %v191
    %360 = vmatpush1.msra.mxu0 %v190
    %361 = vmatprep.subr.mxu0 %v253
    %362 = vmatpush2.msra.mxu0 %v252
    %363 = vmatprep.subr.mxu0 %v251
    %364 = vmatpush2.msra.mxu0 %v250
    %365 = vmatprep.subr.mxu0 %v249
    %366 = vmatpush2.msra.mxu0 %v248
    %367 = vmatprep.subr.mxu0 %v247
    %368 = vmatpush2.msra.mxu0 %v246
    %369 = vmatprep.subr.mxu0 %v245
    %370 = vmatpush2.msra.mxu0 %v244
    %371 = vmatprep.subr.mxu0 %v243
    %372 = vmatpush2.msra.mxu0 %v242
    %373 = vmatprep.subr.mxu0 %v241
    %374 = vmatpush2.msra.mxu0 %v240
    %375 = vmatprep.subr.mxu0 %v239
    %376 = vmatpush2.msra.mxu0 %v238
    %377 = vmatprep.subr.mxu0 %v237
    %378 = vmatpush2.msra.mxu0 %v236
    %379 = vmatprep.subr.mxu0 %v235
    %380 = vmatpush2.msra.mxu0 %v234
    %381 = vmatprep.subr.mxu0 %v233
    %382 = vmatpush2.msra.mxu0 %v232
    %383 = vmatprep.subr.mxu0 %v231
    %384 = vmatpush2.msra.mxu0 %v230
    %385 = vmatprep.subr.mxu0 %v229
    %386 = vmatpush2.msra.mxu0 %v228
    %387 = vmatprep.subr.mxu0 %v227
    %388 = vmatpush2.msra.mxu0 %v226
    %389 = vmatprep.subr.mxu0 %v225
    %390 = vmatpush2.msra.mxu0 %v224
    %391 = vmatprep.subr.mxu0 %v223
    %392 = vmatpush2.msra.mxu0 %v222
    %393 = vmatprep.mubr.f32.mxu0 %v328
    %394 = vmatmul.mubr.f32.gmra.mxu0 %v327
    %v395 = vpop.f32.mrf.mxu0
    %v396 = vadd.f32 1e-05, %v395
    %v397 = vpop.f32.mrf.mxu0
    %v398 = vadd.f32 1e-05, %v397
    %399 = vdwg.mxu0
    %v400 = vrsqrt.pop %v396
    %v401 = vrsqrt.pop %v398
    %v402 = vmul.f32 %v325, %v400
    %v403 = vmul.f32 %v326, %v401
    %v405 = vlaneseq
    %v406 = vshrl.u32 %v405, 7
    %v407 = vsub.s32 0, %v406
    %v408 = vrot.slane %v187, %v407
    %v409 = vlaneseq
    %v410 = vshrl.u32 %v409, 7
    %v411 = vsub.s32 1, %v410
    %v412 = vrot.slane %v187, %v411
    %v415 = vmul.f32 %v402, %v408
    %v416 = vmul.f32 %v403, %v412
    %v418 = vlaneseq
    %v419 = vshrl.u32 %v418, 7
    %v420 = vsub.s32 0, %v419
    %v421 = vrot.slane %v189, %v420
    %v422 = vlaneseq
    %v423 = vshrl.u32 %v422, 7
    %v424 = vsub.s32 1, %v423
    %v425 = vrot.slane %v189, %v424
    %v428 = vadd.f32 %v415, %v421
    %v429 = vadd.f32 %v416, %v425
    %v430 = vld [vmem:[%s4] ss:$4 sm:$0x3]
    %v431 = vld [vmem:[#allocation2] sm:$0xff]
    %v432 = vld [vmem:[#allocation2 + $0x8] sm:$0xff]
    %v433 = vld [vmem:[#allocation2 + $0x10] sm:$0xff]
    %v434 = vld [vmem:[#allocation2 + $0x18] sm:$0xff]
    %v435 = vld [vmem:[#allocation2 + $0x20] sm:$0xff]
    %v436 = vld [vmem:[#allocation2 + $0x28] sm:$0xff]
    %v437 = vld [vmem:[#allocation2 + $0x30] sm:$0xff]
    %v438 = vld [vmem:[#allocation2 + $0x38] sm:$0xff]
    %v439 = vld [vmem:[#allocation2 + $0x40] sm:$0xff]
    %v440 = vld [vmem:[#allocation2 + $0x48] sm:$0xff]
    %v441 = vld [vmem:[#allocation2 + $0x50] sm:$0xff]
    %v442 = vld [vmem:[#allocation2 + $0x58] sm:$0xff]
    %v443 = vld [vmem:[#allocation2 + $0x60] sm:$0xff]
    %v444 = vld [vmem:[#allocation2 + $0x68] sm:$0xff]
    %v445 = vld [vmem:[#allocation2 + $0x70] sm:$0xff]
    %v446 = vld [vmem:[#allocation2 + $0x78] sm:$0xff]
    %v447 = vld [vmem:[#allocation2 + $0x80] sm:$0xff]
    %v448 = vld [vmem:[#allocation2 + $0x88] sm:$0xff]
    %v449 = vld [vmem:[#allocation2 + $0x90] sm:$0xff]
    %v450 = vld [vmem:[#allocation2 + $0x98] sm:$0xff]
    %v451 = vld [vmem:[#allocation2 + $0xa0] sm:$0xff]
    %v452 = vld [vmem:[#allocation2 + $0xa8] sm:$0xff]
    %v453 = vld [vmem:[#allocation2 + $0xb0] sm:$0xff]
    %v454 = vld [vmem:[#allocation2 + $0xb8] sm:$0xff]
    %v455 = vld [vmem:[#allocation2 + $0xc0] sm:$0xff]
    %v456 = vld [vmem:[#allocation2 + $0xc8] sm:$0xff]
    %v457 = vld [vmem:[#allocation2 + $0xd0] sm:$0xff]
    %v458 = vld [vmem:[#allocation2 + $0xd8] sm:$0xff]
    %v459 = vld [vmem:[#allocation2 + $0xe0] sm:$0xff]
    %v460 = vld [vmem:[#allocation2 + $0xe8] sm:$0xff]
    %v461 = vld [vmem:[#allocation2 + $0xf0] sm:$0xff]
    %v462 = vld [vmem:[#allocation2 + $0xf8] sm:$0xff]
    %v463 = vld [vmem:[#allocation2 + $0x100] sm:$0xff]
    %v464 = vld [vmem:[#allocation2 + $0x108] sm:$0xff]
    %v465 = vld [vmem:[#allocation2 + $0x110] sm:$0xff]
    %v466 = vld [vmem:[#allocation2 + $0x118] sm:$0xff]
    %v467 = vld [vmem:[#allocation2 + $0x120] sm:$0xff]
    %v468 = vld [vmem:[#allocation2 + $0x128] sm:$0xff]
    %v469 = vld [vmem:[#allocation2 + $0x130] sm:$0xff]
    %v470 = vld [vmem:[#allocation2 + $0x138] sm:$0xff]
    %v471 = vld [vmem:[#allocation2 + $0x140] sm:$0xff]
    %v472 = vld [vmem:[#allocation2 + $0x148] sm:$0xff]
    %v473 = vld [vmem:[#allocation2 + $0x150] sm:$0xff]
    %v474 = vld [vmem:[#allocation2 + $0x158] sm:$0xff]
    %v475 = vld [vmem:[#allocation2 + $0x160] sm:$0xff]
    %v476 = vld [vmem:[#allocation2 + $0x168] sm:$0xff]
    %v477 = vld [vmem:[#allocation2 + $0x170] sm:$0xff]
    %v478 = vld [vmem:[#allocation2 + $0x178] sm:$0xff]
    %v479 = vld [vmem:[#allocation2 + $0x180] sm:$0xff]
    %v480 = vld [vmem:[#allocation2 + $0x188] sm:$0xff]
    %v481 = vld [vmem:[#allocation2 + $0x190] sm:$0xff]
    %v482 = vld [vmem:[#allocation2 + $0x198] sm:$0xff]
    %v483 = vld [vmem:[#allocation2 + $0x1a0] sm:$0xff]
    %v484 = vld [vmem:[#allocation2 + $0x1a8] sm:$0xff]
    %v485 = vld [vmem:[#allocation2 + $0x1b0] sm:$0xff]
    %v486 = vld [vmem:[#allocation2 + $0x1b8] sm:$0xff]
    %v487 = vld [vmem:[#allocation2 + $0x1c0] sm:$0xff]
    %v488 = vld [vmem:[#allocation2 + $0x1c8] sm:$0xff]
    %v489 = vld [vmem:[#allocation2 + $0x1d0] sm:$0xff]
    %v490 = vld [vmem:[#allocation2 + $0x1d8] sm:$0xff]
    %v491 = vld [vmem:[#allocation2 + $0x1e0] sm:$0xff]
    %v492 = vld [vmem:[#allocation2 + $0x1e8] sm:$0xff]
    %v493 = vld [vmem:[#allocation2 + $0x1f0] sm:$0xff]
    %v494 = vld [vmem:[#allocation2 + $0x1f8] sm:$0xff]
    %v496 = vlaneseq
    %v497 = vshrl.u32 %v496, 7
    %v498 = vsub.s32 0, %v497
    %v499 = vrot.slane %v430, %v498
    %v500 = vlaneseq
    %v501 = vshrl.u32 %v500, 7
    %v502 = vsub.s32 1, %v501
    %v503 = vrot.slane %v430, %v502
    %506 = vmatprep.subr.mxu0 %v462
    %507 = vmatpush1.msra.mxu0 %v461
    %508 = vmatprep.subr.mxu0 %v460
    %509 = vmatpush1.msra.mxu0 %v459
    %510 = vmatprep.subr.mxu0 %v458
    %511 = vmatpush1.msra.mxu0 %v457
    %512 = vmatprep.subr.mxu0 %v456
    %513 = vmatpush1.msra.mxu0 %v455
    %514 = vmatprep.subr.mxu0 %v454
    %515 = vmatpush1.msra.mxu0 %v453
    %516 = vmatprep.subr.mxu0 %v452
    %517 = vmatpush1.msra.mxu0 %v451
    %518 = vmatprep.subr.mxu0 %v450
    %519 = vmatpush1.msra.mxu0 %v449
    %520 = vmatprep.subr.mxu0 %v448
    %521 = vmatpush1.msra.mxu0 %v447
    %522 = vmatprep.subr.mxu0 %v446
    %523 = vmatpush1.msra.mxu0 %v445
    %524 = vmatprep.subr.mxu0 %v444
    %525 = vmatpush1.msra.mxu0 %v443
    %526 = vmatprep.subr.mxu0 %v442
    %527 = vmatpush1.msra.mxu0 %v441
    %528 = vmatprep.subr.mxu0 %v440
    %529 = vmatpush1.msra.mxu0 %v439
    %530 = vmatprep.subr.mxu0 %v438
    %531 = vmatpush1.msra.mxu0 %v437
    %532 = vmatprep.subr.mxu0 %v436
    %533 = vmatpush1.msra.mxu0 %v435
    %534 = vmatprep.subr.mxu0 %v434
    %535 = vmatpush1.msra.mxu0 %v433
    %536 = vmatprep.subr.mxu0 %v432
    %537 = vmatpush1.msra.mxu0 %v431
    %538 = vmatprep.subr.mxu0 %v494
    %539 = vmatpush2.msra.mxu0 %v493
    %540 = vmatprep.subr.mxu0 %v492
    %541 = vmatpush2.msra.mxu0 %v491
    %542 = vmatprep.subr.mxu0 %v490
    %543 = vmatpush2.msra.mxu0 %v489
    %544 = vmatprep.subr.mxu0 %v488
    %545 = vmatpush2.msra.mxu0 %v487
    %546 = vmatprep.subr.mxu0 %v486
    %547 = vmatpush2.msra.mxu0 %v485
    %548 = vmatprep.subr.mxu0 %v484
    %549 = vmatpush2.msra.mxu0 %v483
    %550 = vmatprep.subr.mxu0 %v482
    %551 = vmatpush2.msra.mxu0 %v481
    %552 = vmatprep.subr.mxu0 %v480
    %553 = vmatpush2.msra.mxu0 %v479
    %554 = vmatprep.subr.mxu0 %v478
    %555 = vmatpush2.msra.mxu0 %v477
    %556 = vmatprep.subr.mxu0 %v476
    %557 = vmatpush2.msra.mxu0 %v475
    %558 = vmatprep.subr.mxu0 %v474
    %559 = vmatpush2.msra.mxu0 %v473
    %560 = vmatprep.subr.mxu0 %v472
    %561 = vmatpush2.msra.mxu0 %v471
    %562 = vmatprep.subr.mxu0 %v470
    %563 = vmatpush2.msra.mxu0 %v469
    %564 = vmatprep.subr.mxu0 %v468
    %565 = vmatpush2.msra.mxu0 %v467
    %566 = vmatprep.subr.mxu0 %v466
    %567 = vmatpush2.msra.mxu0 %v465
    %568 = vmatprep.subr.mxu0 %v464
    %569 = vmatpush2.msra.mxu0 %v463
    %570 = vmatprep.mubr.f32.mxu0 %v429
    %571 = vmatmul.mubr.f32.gmra.mxu0 %v428
    %v572 = vpop.f32.mrf.mxu0
    %v573 = vadd.f32 %v499, %v572
    %v574 = vpop.f32.mrf.mxu0
    %v575 = vadd.f32 %v503, %v574
    %576 = vdwg.mxu0
    %v577 = vxor.u32 %v573, 2147483648
    %v578 = vxor.u32 %v575, 2147483648
    %v579 = vmul.f32 %v577, 1.442695
    %v580 = vpow.pop %v579
    %v581 = vmul.f32 %v578, 1.442695
    %v582 = vpow.pop %v581
    %v583 = vadd.f32 %v580, 1.0
    %v584 = vadd.f32 %v582, 1.0
    %v585 = vrcp.pop %v583
    %v586 = vmul.f32 1.0, %v585
    %v587 = vrcp.pop %v584
    %v588 = vmul.f32 1.0, %v587
    %v589 = vadd.f32 %v586, %v428
    %v590 = vadd.f32 %v588, %v429
    %s591 = scalar_lea.vmem %s4, 1
    %v592 = vld [vmem:[%s591] ss:$4 sm:$0x3]
    %s593 = scalar_lea.vmem %s4, 2
    %v594 = vld [vmem:[%s593] ss:$4 sm:$0x3]
    %595 = vmatprep.subr.mxu0 %v221
    %596 = vmatpush1.msra.mxu0 %v220
    %597 = vmatprep.subr.mxu0 %v219
    %598 = vmatpush1.msra.mxu0 %v218
    %599 = vmatprep.subr.mxu0 %v217
    %600 = vmatpush1.msra.mxu0 %v216
    %601 = vmatprep.subr.mxu0 %v215
    %602 = vmatpush1.msra.mxu0 %v214
    %603 = vmatprep.subr.mxu0 %v213
    %604 = vmatpush1.msra.mxu0 %v212
    %605 = vmatprep.subr.mxu0 %v211
    %606 = vmatpush1.msra.mxu0 %v210
    %607 = vmatprep.subr.mxu0 %v209
    %608 = vmatpush1.msra.mxu0 %v208
    %609 = vmatprep.subr.mxu0 %v207
    %610 = vmatpush1.msra.mxu0 %v206
    %611 = vmatprep.subr.mxu0 %v205
    %612 = vmatpush1.msra.mxu0 %v204
    %613 = vmatprep.subr.mxu0 %v203
    %614 = vmatpush1.msra.mxu0 %v202
    %615 = vmatprep.subr.mxu0 %v201
    %616 = vmatpush1.msra.mxu0 %v200
    %617 = vmatprep.subr.mxu0 %v199
    %618 = vmatpush1.msra.mxu0 %v198
    %619 = vmatprep.subr.mxu0 %v197
    %620 = vmatpush1.msra.mxu0 %v196
    %621 = vmatprep.subr.mxu0 %v195
    %622 = vmatpush1.msra.mxu0 %v194
    %623 = vmatprep.subr.mxu0 %v193
    %624 = vmatpush1.msra.mxu0 %v192
    %625 = vmatprep.subr.mxu0 %v191
    %626 = vmatpush1.msra.mxu0 %v190
    %627 = vmatprep.subr.mxu0 %v253
    %628 = vmatpush2.msra.mxu0 %v252
    %629 = vmatprep.subr.mxu0 %v251
    %630 = vmatpush2.msra.mxu0 %v250
    %631 = vmatprep.subr.mxu0 %v249
    %632 = vmatpush2.msra.mxu0 %v248
    %633 = vmatprep.subr.mxu0 %v247
    %634 = vmatpush2.msra.mxu0 %v246
    %635 = vmatprep.subr.mxu0 %v245
    %636 = vmatpush2.msra.mxu0 %v244
    %637 = vmatprep.subr.mxu0 %v243
    %638 = vmatpush2.msra.mxu0 %v242
    %639 = vmatprep.subr.mxu0 %v241
    %640 = vmatpush2.msra.mxu0 %v240
    %641 = vmatprep.subr.mxu0 %v239
    %642 = vmatpush2.msra.mxu0 %v238
    %643 = vmatprep.subr.mxu0 %v237
    %644 = vmatpush2.msra.mxu0 %v236
    %645 = vmatprep.subr.mxu0 %v235
    %646 = vmatpush2.msra.mxu0 %v234
    %647 = vmatprep.subr.mxu0 %v233
    %648 = vmatpush2.msra.mxu0 %v232
    %649 = vmatprep.subr.mxu0 %v231
    %650 = vmatpush2.msra.mxu0 %v230
    %651 = vmatprep.subr.mxu0 %v229
    %652 = vmatpush2.msra.mxu0 %v228
    %653 = vmatprep.subr.mxu0 %v227
    %654 = vmatpush2.msra.mxu0 %v226
    %655 = vmatprep.subr.mxu0 %v225
    %656 = vmatpush2.msra.mxu0 %v224
    %657 = vmatprep.subr.mxu0 %v223
    %658 = vmatpush2.msra.mxu0 %v222
    %659 = vmatprep.mubr.f32.mxu0 %v590
    %660 = vmatmul.mubr.f32.gmra.mxu0 %v589
    %v661 = vpop.f32.mrf.mxu0
    %v662 = vadd.f32 0.0, %v661
    %v663 = vpop.f32.mrf.mxu0
    %v664 = vadd.f32 0.0, %v663
    %665 = vdwg.mxu0
    %v666 = vsub.f32 %v589, %v662
    %v667 = vsub.f32 %v590, %v664
    %v668 = vmul.f32 %v666, %v666
    %v669 = vmul.f32 %v667, %v667
    %670 = vmatprep.subr.mxu0 %v221
    %671 = vmatpush1.msra.mxu0 %v220
    %672 = vmatprep.subr.mxu0 %v219
    %673 = vmatpush1.msra.mxu0 %v218
    %674 = vmatprep.subr.mxu0 %v217
    %675 = vmatpush1.msra.mxu0 %v216
    %676 = vmatprep.subr.mxu0 %v215
    %677 = vmatpush1.msra.mxu0 %v214
    %678 = vmatprep.subr.mxu0 %v213
    %679 = vmatpush1.msra.mxu0 %v212
    %680 = vmatprep.subr.mxu0 %v211
    %681 = vmatpush1.msra.mxu0 %v210
    %682 = vmatprep.subr.mxu0 %v209
    %683 = vmatpush1.msra.mxu0 %v208
    %684 = vmatprep.subr.mxu0 %v207
    %685 = vmatpush1.msra.mxu0 %v206
    %686 = vmatprep.subr.mxu0 %v205
    %687 = vmatpush1.msra.mxu0 %v204
    %688 = vmatprep.subr.mxu0 %v203
    %689 = vmatpush1.msra.mxu0 %v202
    %690 = vmatprep.subr.mxu0 %v201
    %691 = vmatpush1.msra.mxu0 %v200
    %692 = vmatprep.subr.mxu0 %v199
    %693 = vmatpush1.msra.mxu0 %v198
    %694 = vmatprep.subr.mxu0 %v197
    %695 = vmatpush1.msra.mxu0 %v196
    %696 = vmatprep.subr.mxu0 %v195
    %697 = vmatpush1.msra.mxu0 %v194
    %698 = vmatprep.subr.mxu0 %v193
    %699 = vmatpush1.msra.mxu0 %v192
    %700 = vmatprep.subr.mxu0 %v191
    %701 = vmatpush1.msra.mxu0 %v190
    %702 = vmatprep.subr.mxu0 %v253
    %703 = vmatpush2.msra.mxu0 %v252
    %704 = vmatprep.subr.mxu0 %v251
    %705 = vmatpush2.msra.mxu0 %v250
    %706 = vmatprep.subr.mxu0 %v249
    %707 = vmatpush2.msra.mxu0 %v248
    %708 = vmatprep.subr.mxu0 %v247
    %709 = vmatpush2.msra.mxu0 %v246
    %710 = vmatprep.subr.mxu0 %v245
    %711 = vmatpush2.msra.mxu0 %v244
    %712 = vmatprep.subr.mxu0 %v243
    %713 = vmatpush2.msra.mxu0 %v242
    %714 = vmatprep.subr.mxu0 %v241
    %715 = vmatpush2.msra.mxu0 %v240
    %716 = vmatprep.subr.mxu0 %v239
    %717 = vmatpush2.msra.mxu0 %v238
    %718 = vmatprep.subr.mxu0 %v237
    %719 = vmatpush2.msra.mxu0 %v236
    %720 = vmatprep.subr.mxu0 %v235
    %721 = vmatpush2.msra.mxu0 %v234
    %722 = vmatprep.subr.mxu0 %v233
    %723 = vmatpush2.msra.mxu0 %v232
    %724 = vmatprep.subr.mxu0 %v231
    %725 = vmatpush2.msra.mxu0 %v230
    %726 = vmatprep.subr.mxu0 %v229
    %727 = vmatpush2.msra.mxu0 %v228
    %728 = vmatprep.subr.mxu0 %v227
    %729 = vmatpush2.msra.mxu0 %v226
    %730 = vmatprep.subr.mxu0 %v225
    %731 = vmatpush2.msra.mxu0 %v224
    %732 = vmatprep.subr.mxu0 %v223
    %733 = vmatpush2.msra.mxu0 %v222
    %734 = vmatprep.mubr.f32.mxu0 %v669
    %735 = vmatmul.mubr.f32.gmra.mxu0 %v668
    %v736 = vpop.f32.mrf.mxu0
    %v737 = vadd.f32 1e-05, %v736
    %v738 = vpop.f32.mrf.mxu0
    %v739 = vadd.f32 1e-05, %v738
    %740 = vdwg.mxu0
    %v741 = vrsqrt.pop %v737
    %v742 = vrsqrt.pop %v739
    %v743 = vmul.f32 %v666, %v741
    %v744 = vmul.f32 %v667, %v742
    %v746 = vlaneseq
    %v747 = vshrl.u32 %v746, 7
    %v748 = vsub.s32 0, %v747
    %v749 = vrot.slane %v592, %v748
    %v750 = vlaneseq
    %v751 = vshrl.u32 %v750, 7
    %v752 = vsub.s32 1, %v751
    %v753 = vrot.slane %v592, %v752
    %v756 = vmul.f32 %v743, %v749
    %v757 = vmul.f32 %v744, %v753
    %v759 = vlaneseq
    %v760 = vshrl.u32 %v759, 7
    %v761 = vsub.s32 0, %v760
    %v762 = vrot.slane %v594, %v761
    %v763 = vlaneseq
    %v764 = vshrl.u32 %v763, 7
    %v765 = vsub.s32 1, %v764
    %v766 = vrot.slane %v594, %v765
    %v769 = vadd.f32 %v756, %v762
    %v770 = vadd.f32 %v757, %v766
    %v771 = vld [vmem:[%s6] sm:$0x1]
    %v772 = vld [vmem:[%s5] sm:$0xff]
    %v773 = vld [vmem:[%s5 + $0x8] sm:$0xff]
    %v774 = vld [vmem:[%s5 + $0x10] sm:$0xff]
    %v775 = vld [vmem:[%s5 + $0x18] sm:$0xff]
    %v776 = vld [vmem:[%s5 + $0x20] sm:$0xff]
    %v777 = vld [vmem:[%s5 + $0x28] sm:$0xff]
    %v778 = vld [vmem:[%s5 + $0x30] sm:$0xff]
    %v779 = vld [vmem:[%s5 + $0x38] sm:$0xff]
    %v780 = vld [vmem:[%s5 + $0x40] sm:$0xff]
    %v781 = vld [vmem:[%s5 + $0x48] sm:$0xff]
    %v782 = vld [vmem:[%s5 + $0x50] sm:$0xff]
    %v783 = vld [vmem:[%s5 + $0x58] sm:$0xff]
    %v784 = vld [vmem:[%s5 + $0x60] sm:$0xff]
    %v785 = vld [vmem:[%s5 + $0x68] sm:$0xff]
    %v786 = vld [vmem:[%s5 + $0x70] sm:$0xff]
    %v787 = vld [vmem:[%s5 + $0x78] sm:$0xff]
    %v788 = vld [vmem:[%s5 + $0x80] sm:$0xff]
    %v789 = vld [vmem:[%s5 + $0x88] sm:$0xff]
    %v790 = vld [vmem:[%s5 + $0x90] sm:$0xff]
    %v791 = vld [vmem:[%s5 + $0x98] sm:$0xff]
    %v792 = vld [vmem:[%s5 + $0xa0] sm:$0xff]
    %v793 = vld [vmem:[%s5 + $0xa8] sm:$0xff]
    %v794 = vld [vmem:[%s5 + $0xb0] sm:$0xff]
    %v795 = vld [vmem:[%s5 + $0xb8] sm:$0xff]
    %v796 = vld [vmem:[%s5 + $0xc0] sm:$0xff]
    %v797 = vld [vmem:[%s5 + $0xc8] sm:$0xff]
    %v798 = vld [vmem:[%s5 + $0xd0] sm:$0xff]
    %v799 = vld [vmem:[%s5 + $0xd8] sm:$0xff]
    %v800 = vld [vmem:[%s5 + $0xe0] sm:$0xff]
    %v801 = vld [vmem:[%s5 + $0xe8] sm:$0xff]
    %v802 = vld [vmem:[%s5 + $0xf0] sm:$0xff]
    %v803 = vld [vmem:[%s5 + $0xf8] sm:$0xff]
    %v804 = vlaneseq
    %v805 = vshrl.u32 %v804, 7
    %v806 = vsub.s32 0, %v805
    %v807 = vrot.slane %v771, %v806
    %808 = vmatprep.subr.mxu0 0.0
    %809 = vmatpush1.msra.mxu0 %v787
    %810 = vmatprep.subr.mxu0 0.0
    %811 = vmatpush1.msra.mxu0 %v786
    %812 = vmatprep.subr.mxu0 0.0
    %813 = vmatpush1.msra.mxu0 %v785
    %814 = vmatprep.subr.mxu0 0.0
    %815 = vmatpush1.msra.mxu0 %v784
    %816 = vmatprep.subr.mxu0 0.0
    %817 = vmatpush1.msra.mxu0 %v783
    %818 = vmatprep.subr.mxu0 0.0
    %819 = vmatpush1.msra.mxu0 %v782
    %820 = vmatprep.subr.mxu0 0.0
    %821 = vmatpush1.msra.mxu0 %v781
    %822 = vmatprep.subr.mxu0 0.0
    %823 = vmatpush1.msra.mxu0 %v780
    %824 = vmatprep.subr.mxu0 0.0
    %825 = vmatpush1.msra.mxu0 %v779
    %826 = vmatprep.subr.mxu0 0.0
    %827 = vmatpush1.msra.mxu0 %v778
    %828 = vmatprep.subr.mxu0 0.0
    %829 = vmatpush1.msra.mxu0 %v777
    %830 = vmatprep.subr.mxu0 0.0
    %831 = vmatpush1.msra.mxu0 %v776
    %832 = vmatprep.subr.mxu0 0.0
    %833 = vmatpush1.msra.mxu0 %v775
    %834 = vmatprep.subr.mxu0 0.0
    %835 = vmatpush1.msra.mxu0 %v774
    %836 = vmatprep.subr.mxu0 0.0
    %837 = vmatpush1.msra.mxu0 %v773
    %838 = vmatprep.subr.mxu0 0.0
    %839 = vmatpush1.msra.mxu0 %v772
    %840 = vmatprep.subr.mxu0 0.0
    %841 = vmatpush2.msra.mxu0 %v803
    %842 = vmatprep.subr.mxu0 0.0
    %843 = vmatpush2.msra.mxu0 %v802
    %844 = vmatprep.subr.mxu0 0.0
    %845 = vmatpush2.msra.mxu0 %v801
    %846 = vmatprep.subr.mxu0 0.0
    %847 = vmatpush2.msra.mxu0 %v800
    %848 = vmatprep.subr.mxu0 0.0
    %849 = vmatpush2.msra.mxu0 %v799
    %850 = vmatprep.subr.mxu0 0.0
    %851 = vmatpush2.msra.mxu0 %v798
    %852 = vmatprep.subr.mxu0 0.0
    %853 = vmatpush2.msra.mxu0 %v797
    %854 = vmatprep.subr.mxu0 0.0
    %855 = vmatpush2.msra.mxu0 %v796
    %856 = vmatprep.subr.mxu0 0.0
    %857 = vmatpush2.msra.mxu0 %v795
    %858 = vmatprep.subr.mxu0 0.0
    %859 = vmatpush2.msra.mxu0 %v794
    %860 = vmatprep.subr.mxu0 0.0
    %861 = vmatpush2.msra.mxu0 %v793
    %862 = vmatprep.subr.mxu0 0.0
    %863 = vmatpush2.msra.mxu0 %v792
    %864 = vmatprep.subr.mxu0 0.0
    %865 = vmatpush2.msra.mxu0 %v791
    %866 = vmatprep.subr.mxu0 0.0
    %867 = vmatpush2.msra.mxu0 %v790
    %868 = vmatprep.subr.mxu0 0.0
    %869 = vmatpush2.msra.mxu0 %v789
    %870 = vmatprep.subr.mxu0 0.0
    %871 = vmatpush2.msra.mxu0 %v788
    %872 = vmatprep.mubr.f32.mxu0 %v770
    %873 = vmatmul.mubr.f32.gmra.mxu0 %v769
    %v874 = vpop.f32.mrf.mxu0
    %v875 = vadd.f32 %v807, %v874
    %v876 = vpop.f32.mrf.mxu0
    %877 = vdwg.mxu0
    %v878 = vxor.u32 %v875, 2147483648
    %v879 = vmul.f32 %v878, 1.442695
    %v880 = vpow.pop %v879
    %v881 = vadd.f32 %v880, 1.0
    %v882 = vrcp.pop %v881
    %v883 = vmul.f32 1.0, %v882
    %vm884 = vcmask 523264
    %885 = vst.msk [vmem:[#allocation7] sm:$0xff] %vm884, %v883
    // Predicated region
    $region42: #{tpu_custom_call.1} parent=1 // pred_check
      _
    $region43: #{tpu_custom_call.1} parent=1 // pred_check_branch
      %887 = sbr.rel (0) target = $region45
    $region44: #{tpu_custom_call.1} parent=1 // pred_region
      %s889 = ssub.s32 128, 128
      %890 = vsyncadd [#allocation4], %s889
      %s892 = sshll.u32 [#allocation7], 4
      %s893 = int_to_ptr.vmem [resolvable:$true] %s892
      %895 = dma.vmem_to_hbm [thread:$0]  %s893, 128, %s8, [#allocation4]
    $region45: #{tpu_custom_call.1} parent=1 // pred_fallthru
      _
    // Predicated region
    $region46: #{tpu_custom_call.1} parent=1 // pred_check
      _
    $region47: #{tpu_custom_call.1} parent=1 // pred_check_branch
      %897 = sbr.rel (0) target = $region49
    $region48: #{tpu_custom_call.1} parent=1 // pred_region
      %898 = dma.done [#allocation4], 128
    $region49: #{tpu_custom_call.1} parent=1 // pred_fallthru
      _
    %899 = vsyncpa [#allocation3], 1
    %900 = vsyncpa [#allocation6], 1
    %901 = vsyncpa [#allocation4], 1

</llo_original>
